<compile_context>
chip_gen: v6e
topology: v6e:2x2x1
jax: 0.10.0
libtpu: 0.0.40
codegen_flags: <defaults>
</compile_context>

<pallas_src>
import functools

import jax
import jax.numpy as jnp
from jax.experimental import pallas as pl
from jax.experimental.pallas import tpu as pltpu


# Fused-all-layers path is used when the f32 resident activation is <= this.
_FUSED_VMEM_ACT_LIMIT = 1 * 1024 * 1024  # 1 MiB (~2048 tokens at Hp=128)


def _round_up(x, m):
    return ((x + m - 1) // m) * m


def _choose_tiles(B, S):
    """Token tile (rows), batch block, padded sequence length for the tiled path."""
    s8 = _round_up(S, 8)
    tile_s = min(s8, 512)                 # 512-row tiles: ~85% of HBM roofline
    S_pad = _round_up(s8, tile_s)
    tb_cap = max(1, 1024 // tile_s)       # aim for up to ~1024 rows per grid step
    tb = 1
    for d in range(1, min(B, tb_cap) + 1):
        if B % d == 0:
            tb = d
    return tile_s, tb, S_pad


# ----------------------------------------------------------------------------
# Shared in-kernel LayerNorm over the REAL hid_dim lanes (two-pass, lane-masked
# so the zero-padded lanes do not perturb mean/variance).
# ----------------------------------------------------------------------------
def _layer_norm(y, gamma, beta, hid_dim, hid_pad):
    inv_h = 1.0 / float(hid_dim)
    mean = jnp.sum(y, axis=-1, keepdims=True) * inv_h
    lane = jax.lax.broadcasted_iota(jnp.int32, (1, hid_pad), 1)
    lmask = (lane < hid_dim).astype(jnp.float32)
    d = (y - mean) * lmask
    var = jnp.sum(d * d, axis=-1, keepdims=True) * inv_h
    # Padded lanes of gamma/beta are zero -> output padding lanes stay zero.
    return d * jax.lax.rsqrt(var + 1e-5) * gamma + beta


# ----------------------------------------------------------------------------
# FUSED PATH: all layers in one pallas_call, activation resident in VMEM.
# Grid = (n_layers,), "arbitrary" (each layer depends on the previous one).
# ----------------------------------------------------------------------------
def fused_encoder_kernel(x_ref, m_ref, w_ref, b_ref, glbb_ref, gg2b_ref,
                         lng_ref, lnb_ref, out_ref, x_scr,
                         *, hid_dim, hid_pad, mm_dtype):
    l = pl.program_id(0)

    @pl.when(l == 0)
    def _():
        x_scr[...] = x_ref[...]                       # load activation once

    x = x_scr[...]                                    # [B, Sp, Hp]  f32
    m3 = m_ref[...]                                   # [B, Sp, 1]   f32
    B, Sp, _ = x.shape

    # Single MXU pass producing [_src | gate_s | x@glb_w.T | x@(gg_w glb_w).T].
    xr = x.reshape(B * Sp, hid_pad).astype(mm_dtype)
    h = jnp.dot(xr, w_ref[0], preferred_element_type=jnp.float32)
    h = h.reshape(B, Sp, 4 * hid_pad)

    hs = h[..., :2 * hid_pad] + b_ref[0]              # per-token biases
    _src = hs[..., :hid_pad]
    gate_s = hs[..., hid_pad:]

    # Global path: masked mean commutes with the linear global layers, so
    #   gvp    = mean_mask(x @ glb_w.T) + glb_b
    #   gate_g = mean_mask(x @ (gg_w glb_w).T) + (glb_b @ gg_w.T + gg_b)
    cnt = jnp.sum(m3, axis=1, keepdims=True)                          # [B,1,1]
    gvp = jnp.sum(h[..., 2 * hid_pad:3 * hid_pad] * m3,
                  axis=1, keepdims=True) / cnt + glbb_ref[0]          # [B,1,Hp]
    gate_g = jnp.sum(h[..., 3 * hid_pad:] * m3,
                     axis=1, keepdims=True) / cnt + gg2b_ref[0]       # [B,1,Hp]

    gate = jax.nn.sigmoid(gate_s + gate_g)
    mixed = _src * gate + gvp * (1.0 - gate)
    # src + relu(src)  ==  where(src > 0, 2*src, src)   (dropout = identity)
    y = jnp.where(mixed > 0.0, 2.0 * mixed, mixed)
    z = _layer_norm(y, lng_ref[0], lnb_ref[0], hid_dim, hid_pad)

    x_scr[...] = z
    out_ref[...] = z.astype(out_ref.dtype)


def _run_fused(x_pad, mask3, prep):
    B, S_pad, Hp = x_pad.shape
    L = prep["n_layers"]
    H4 = 4 * Hp
    kernel = functools.partial(fused_encoder_kernel,
                               hid_dim=prep["H"], hid_pad=Hp,
                               mm_dtype=prep["matmul_dtype"])
    return pl.pallas_call(
        kernel,
        out_shape=jax.ShapeDtypeStruct((B, S_pad, Hp), jnp.float32),
        grid=(L,),
        in_specs=[
            pl.BlockSpec((B, S_pad, Hp), lambda l: (0, 0, 0)),     # x (fetched once)
            pl.BlockSpec((B, S_pad, 1), lambda l: (0, 0, 0)),      # mask
            pl.BlockSpec((1, Hp, H4), lambda l: (l, 0, 0)),        # stacked weights
            pl.BlockSpec((1, 1, 2 * Hp), lambda l: (l, 0, 0)),     # stacked per-token bias
            pl.BlockSpec((1, 1, Hp), lambda l: (l, 0, 0)),         # glb bias
            pl.BlockSpec((1, 1, Hp), lambda l: (l, 0, 0)),         # composed gg bias
            pl.BlockSpec((1, 1, Hp), lambda l: (l, 0, 0)),         # LN gamma
            pl.BlockSpec((1, 1, Hp), lambda l: (l, 0, 0)),         # LN beta
        ],
        out_specs=pl.BlockSpec((B, S_pad, Hp), lambda l: (0, 0, 0)),
        scratch_shapes=[pltpu.VMEM((B, S_pad, Hp), jnp.float32)],  # resident activation
        compiler_params=pltpu.CompilerParams(
            dimension_semantics=("arbitrary",)),
    )(x_pad, mask3, prep["w_stk"], prep["b_stk"], prep["glb_b"],
      prep["gg2_b"], prep["ln_g"], prep["ln_b"])


# ----------------------------------------------------------------------------
# TILED PATH: one pallas_call per layer, tiled over (batch-block, token-tile).
# Also emits the masked partial sums of the OUTPUT so the next layer's global
# path does not re-read the activation from HBM.
# ----------------------------------------------------------------------------
def gated_dss_layer_kernel(x_ref, m_ref, gvp_ref, gg_ref, w_ref, b_ref,
                           lng_ref, lnb_ref, out_ref, psum_ref,
                           *, hid_dim, hid_pad):
    tb, ts, _ = x_ref.shape
    w = w_ref[0]                                           # [Hp, 2*Hp]

    # Reshape in f32 (always (8,128)-tile aligned), cast only for the MXU.
    xr = x_ref[...].astype(jnp.float32).reshape(tb * ts, hid_pad).astype(w.dtype)
    h = jnp.dot(xr, w, preferred_element_type=jnp.float32)
    h = h.reshape(tb, ts, 2 * hid_pad) + b_ref[0]
    _src = h[..., :hid_pad]
    gate_s = h[..., hid_pad:]

    gate = jax.nn.sigmoid(gate_s + gg_ref[...])            # gg_ref: [tb,1,Hp]
    mixed = _src * gate + gvp_ref[...] * (1.0 - gate)
    y = jnp.where(mixed > 0.0, 2.0 * mixed, mixed)
    z = _layer_norm(y, lng_ref[0], lnb_ref[0], hid_dim, hid_pad)

    out_ref[...] = z.astype(out_ref.dtype)

    # Masked partial sum of this layer's output, accumulated over token tiles,
    # for the NEXT layer's global path (avoids a second HBM read of x).
    @pl.when(pl.program_id(1) == 0)
    def _():
        psum_ref[...] = jnp.zeros_like(psum_ref)
    psum_ref[...] += jnp.sum(z * m_ref[...], axis=1, keepdims=True)


def _run_layer_tiled(x, mask3, gvp, gate_g, prep, layer_idx, *, tile_s, tb):
    B, S_pad, Hp = x.shape
    H2 = 2 * Hp
    l = layer_idx
    grid = (B // tb, S_pad // tile_s)
    kernel = functools.partial(gated_dss_layer_kernel,
                               hid_dim=prep["H"], hid_pad=Hp)
    out_shape = (jax.ShapeDtypeStruct((B, S_pad, Hp), x.dtype),
                 jax.ShapeDtypeStruct((B, 1, Hp), jnp.float32))
    return pl.pallas_call(
        kernel,
        out_shape=out_shape,
        grid=grid,
        in_specs=[
            pl.BlockSpec((tb, tile_s, Hp), lambda b, s: (b, s, 0)),     # x tile
            pl.BlockSpec((tb, tile_s, 1), lambda b, s: (b, s, 0)),      # mask tile
            pl.BlockSpec((tb, 1, Hp), lambda b, s: (b, 0, 0)),          # gvp
            pl.BlockSpec((tb, 1, Hp), lambda b, s: (b, 0, 0)),          # gate_g
            pl.BlockSpec((1, Hp, H2), lambda b, s, l=l: (l, 0, 0)),     # W (first 2Hp cols)
            pl.BlockSpec((1, 1, H2), lambda b, s, l=l: (l, 0, 0)),      # bias
            pl.BlockSpec((1, 1, Hp), lambda b, s, l=l: (l, 0, 0)),      # LN gamma
            pl.BlockSpec((1, 1, Hp), lambda b, s, l=l: (l, 0, 0)),      # LN beta
        ],
        out_specs=(
            pl.BlockSpec((tb, tile_s, Hp), lambda b, s: (b, s, 0)),     # out tile
            pl.BlockSpec((tb, 1, Hp), lambda b, s: (b, 0, 0)),          # psum accumulator
        ),
        compiler_params=pltpu.CompilerParams(
            dimension_semantics=("parallel", "arbitrary")),
    )(x, mask3, gvp, gate_g, prep["w_stk"], prep["b_stk"],
      prep["ln_g"], prep["ln_b"])


# ----------------------------------------------------------------------------
# Parameter prep (hoisted: run ONCE per parameter set / dtype).
#   gate_s  = x @ (gs_w @ sia_w).T + (sia_b @ gs_w.T + gs_b)
#   gate_g  = mean @ (gg_w @ glb_w).T + (glb_b @ gg_w.T + gg_b)
# Stacked weight columns: [ sia.T | (gs sia).T | glb.T | (gg glb).T ], zero-padded.
# ----------------------------------------------------------------------------
def prepare_encoder_params(params, *, matmul_dtype=jnp.bfloat16):
    H = params["tok_emb"].shape[1]
    Hp = _round_up(H, 128)
    w_l, b_l, gw_l, gb_l, g2w_l, g2b_l, lg_l, lb_l = ([] for _ in range(8))
    for lp in params["layers"]:
        w_gate = lp["gs_w"] @ lp["sia_w"]
        b_gate = lp["sia_b"] @ lp["gs_w"].T + lp["gs_b"]
        w_gg2 = lp["gg_w"] @ lp["glb_w"]
        b_gg2 = lp["glb_b"] @ lp["gg_w"].T + lp["gg_b"]

        w_stk = jnp.zeros((Hp, 4 * Hp), jnp.float32)
        w_stk = w_stk.at[:H, 0 * Hp:0 * Hp + H].set(lp["sia_w"].T)
        w_stk = w_stk.at[:H, 1 * Hp:1 * Hp + H].set(w_gate.T)
        w_stk = w_stk.at[:H, 2 * Hp:2 * Hp + H].set(lp["glb_w"].T)
        w_stk = w_stk.at[:H, 3 * Hp:3 * Hp + H].set(w_gg2.T)
        b_stk = jnp.zeros((1, 2 * Hp), jnp.float32)
        b_stk = b_stk.at[0, :H].set(lp["sia_b"]).at[0, Hp:Hp + H].set(b_gate)

        w_l.append(w_stk)
        b_l.append(b_stk)
        gw_l.append(jnp.zeros((Hp, Hp), jnp.float32).at[:H, :H].set(lp["glb_w"].T))
        gb_l.append(jnp.zeros((1, Hp), jnp.float32).at[0, :H].set(lp["glb_b"]))
        g2w_l.append(jnp.zeros((Hp, Hp), jnp.float32).at[:H, :H].set(w_gg2.T))
        g2b_l.append(jnp.zeros((1, Hp), jnp.float32).at[0, :H].set(b_gg2))
        lg_l.append(jnp.zeros((1, Hp), jnp.float32).at[0, :H].set(lp["ln_g"]))
        lb_l.append(jnp.zeros((1, Hp), jnp.float32).at[0, :H].set(lp["ln_b"]))

    return {
        "H": H, "Hp": Hp, "n_layers": len(params["layers"]),
        "matmul_dtype": matmul_dtype,
        "tok_emb": params["tok_emb"], "pos_emb": params["pos_emb"],
        "w_stk": jnp.stack(w_l).astype(matmul_dtype),   # [L, Hp, 4*Hp]
        "b_stk": jnp.stack(b_l),                        # [L, 1, 2*Hp]
        "glb_wT": jnp.stack(gw_l),                      # [L, Hp, Hp]   (tiled path)
        "glb_b": jnp.stack(gb_l),                       # [L, 1, Hp]
        "gg2_wT": jnp.stack(g2w_l),                     # [L, Hp, Hp]   (tiled path)
        "gg2_b": jnp.stack(g2b_l),                      # [L, 1, Hp]
        "ln_g": jnp.stack(lg_l),                        # [L, 1, Hp]
        "ln_b": jnp.stack(lb_l),                        # [L, 1, Hp]
    }


# ----------------------------------------------------------------------------
# Encoder forward (embedding lookup is plain-JAX glue).
# ----------------------------------------------------------------------------
def gated_dss_encoder_forward(src_ids, src_mask, prep, *, force_tiled=False):
    """src_ids: [B, S] int32; src_mask: [B, 1, 1, S]."""
    H, Hp = prep["H"], prep["Hp"]
    B, S = src_ids.shape

    scale = jnp.sqrt(jnp.float32(H))
    pos = jnp.arange(S)
    x = (prep["tok_emb"][src_ids] * scale
         + prep["pos_emb"][pos][None, :, :]).astype(jnp.float32)
    mask2 = jnp.squeeze(jnp.squeeze(src_mask, axis=1), axis=1).astype(jnp.float32)

    s8 = _round_up(S, 8)
    use_fused = (not force_tiled) and (B * s8 * Hp * 4 <= _FUSED_VMEM_ACT_LIMIT)

    if use_fused:
        S_pad = s8
        x_pad = jnp.pad(x, ((0, 0), (0, S_pad - S), (0, Hp - H)))
        mask3 = jnp.pad(mask2, ((0, 0), (0, S_pad - S)))[:, :, None]
        out = _run_fused(x_pad, mask3, prep)
    else:
        tile_s, tb, S_pad = _choose_tiles(B, S)
        x_pad = jnp.pad(x, ((0, 0), (0, S_pad - S), (0, Hp - H)))
        x_pad = x_pad.astype(prep["matmul_dtype"])
        mask3 = jnp.pad(mask2, ((0, 0), (0, S_pad - S)))[:, :, None]
        count = jnp.sum(mask2, axis=1, keepdims=True)            # [B, 1]
        # First layer's masked sum comes straight from the embeddings.
        psum = jnp.sum(x_pad.astype(jnp.float32) * mask3, axis=1, keepdims=True)
        x_cur = x_pad
        for l in range(prep["n_layers"]):
            gv = psum[:, 0, :] / count                           # [B, Hp]
            gvp = (gv @ prep["glb_wT"][l] + prep["glb_b"][l])[:, None, :]
            gate_g = (gv @ prep["gg2_wT"][l] + prep["gg2_b"][l])[:, None, :]
            x_cur, psum = _run_layer_tiled(x_cur, mask3, gvp, gate_g, prep, l,
                                           tile_s=tile_s, tb=tb)
        out = x_cur

    return out[:, :S, :H].astype(jnp.float32)


# ----------------------------------------------------------------------------
# Pure-JAX reference (PyTorch semantics, f32, unpadded) for correctness.
# ----------------------------------------------------------------------------
def _ref_layer(src, mask2, p):
    _src = src @ p["sia_w"].T + p["sia_b"]
    m3 = mask2[:, :, None]
    gv = jnp.sum(src * m3, axis=1) / jnp.sum(m3, axis=1)
    gvp = gv @ p["glb_w"].T + p["glb_b"]
    gate = jax.nn.sigmoid(_src @ p["gs_w"].T + p["gs_b"]
                          + (gvp @ p["gg_w"].T + p["gg_b"])[:, None, :])
    mixed = _src * gate + gvp[:, None, :] * (1.0 - gate)
    y = mixed + jax.nn.relu(mixed)
    mean = jnp.mean(y, axis=-1, keepdims=True)
    var = jnp.mean((y - mean) ** 2, axis=-1, keepdims=True)
    return (y - mean) * jax.lax.rsqrt(var + 1e-5) * p["ln_g"] + p["ln_b"]


def _ref_forward(src_ids, src_mask, params):
    H = params["tok_emb"].shape[1]
    S = src_ids.shape[1]
    x = params["tok_emb"][src_ids] * jnp.sqrt(jnp.float32(H)) \
        + params["pos_emb"][jnp.arange(S)][None, :, :]
    mask2 = jnp.squeeze(jnp.squeeze(src_mask, axis=1), axis=1).astype(jnp.float32)
    for lp in params["layers"]:
        x = _ref_layer(x, mask2, lp)
    return x


# ----------------------------------------------------------------------------
# Deterministic parameter initialization (PyTorch [out, in] weight layout).
# ----------------------------------------------------------------------------
def init_params(key, input_dim, hid_dim, n_layers, max_length):
    keys = jax.random.split(key, 2 + n_layers)
    params = {
        "tok_emb": jax.random.normal(keys[0], (input_dim, hid_dim), jnp.float32) * 0.02,
        "pos_emb": jax.random.normal(keys[1], (max_length, hid_dim), jnp.float32) * 0.02,
        "layers": [],
    }
    s = 1.0 / jnp.sqrt(jnp.float32(hid_dim))
    for li in range(n_layers):
        lk = jax.random.split(keys[2 + li], 8)
        lp = {
            "sia_w": jax.random.uniform(lk[0], (hid_dim, hid_dim), jnp.float32, -s, s),
            "sia_b": jax.random.uniform(lk[1], (hid_dim,), jnp.float32, -s, s),
            "glb_w": jax.random.uniform(lk[2], (hid_dim, hid_dim), jnp.float32, -s, s),
            "glb_b": jax.random.uniform(lk[3], (hid_dim,), jnp.float32, -s, s),
            "gs_w": jax.random.uniform(lk[4], (hid_dim, hid_dim), jnp.float32, -s, s),
            "gs_b": jax.random.uniform(lk[5], (hid_dim,), jnp.float32, -s, s),
            "gg_w": jax.random.uniform(lk[6], (hid_dim, hid_dim), jnp.float32, -s, s),
            "gg_b": jax.random.uniform(lk[7], (hid_dim,), jnp.float32, -s, s),
            "ln_g": jnp.ones((hid_dim,), jnp.float32),
            "ln_b": jnp.zeros((hid_dim,), jnp.float32),
        }
        params["layers"].append(lp)
    return params


if __name__ == "__main__":
    INPUT_DIM, HID_DIM, N_LAYERS, MAX_LEN = 50, 32, 2, 100
    B, S = 2, 8

    key = jax.random.PRNGKey(0)
    k_param, k_tok = jax.random.split(key)
    params = init_params(k_param, INPUT_DIM, HID_DIM, N_LAYERS, MAX_LEN)

    src_ids = jax.random.randint(k_tok, (B, S), 0, INPUT_DIM, dtype=jnp.int32)
    # src_mask: [B, 1, 1, S], sequence lengths 8 and 5.
    lengths = jnp.array([8, 5], dtype=jnp.int32)
    src_mask = (jnp.arange(S)[None, :] < lengths[:, None]).astype(jnp.float32)
    src_mask = src_mask[:, None, None, :]

    ref = _ref_forward(src_ids, src_mask, params)

    # ---- f32 everywhere (exact-ish vs reference) ----
    prep_f32 = prepare_encoder_params(params, matmul_dtype=jnp.float32)
    out_fused = jax.block_until_ready(
        gated_dss_encoder_forward(src_ids, src_mask, prep_f32))
    assert out_fused.shape == (B, S, HID_DIM)
    assert jnp.allclose(out_fused, ref, rtol=1e-3, atol=1e-3), "fused f32 mismatch"

    out_tiled = jax.block_until_ready(
        gated_dss_encoder_forward(src_ids, src_mask, prep_f32, force_tiled=True))
    assert jnp.allclose(out_tiled, ref, rtol=1e-3, atol=1e-3), "tiled f32 mismatch"

    # ---- bf16 MXU / storage default (element-wise math stays f32) ----
    prep_bf16 = prepare_encoder_params(params)   # default bfloat16
    out_fused_bf16 = jax.block_until_ready(
        gated_dss_encoder_forward(src_ids, src_mask, prep_bf16))
    assert jnp.allclose(out_fused_bf16, ref, rtol=5e-2, atol=5e-2), "fused bf16 mismatch"

    out_tiled_bf16 = jax.block_until_ready(
        gated_dss_encoder_forward(src_ids, src_mask, prep_bf16, force_tiled=True))
    assert jnp.allclose(out_tiled_bf16, ref, rtol=5e-2, atol=5e-2), "tiled bf16 mismatch"

    print("KERNEL_OK")
</pallas_src>

<mosaic_0001>
module attributes {stable_mosaic.version = 11 : i64} {
  func.func @fused_encoder_kernel(%arg0: i32, %arg1: memref<2x8x128xf32, #tpu.memory_space<vmem>>, %arg2: memref<2x8x1xf32, #tpu.memory_space<vmem>>, %arg3: memref<1x128x512xf32, #tpu.memory_space<vmem>>, %arg4: memref<1x1x256xf32, #tpu.memory_space<vmem>>, %arg5: memref<1x1x128xf32, #tpu.memory_space<vmem>>, %arg6: memref<1x1x128xf32, #tpu.memory_space<vmem>>, %arg7: memref<1x1x128xf32, #tpu.memory_space<vmem>>, %arg8: memref<1x1x128xf32, #tpu.memory_space<vmem>>, %arg9: memref<2x8x128xf32, #tpu.memory_space<vmem>>, %arg10: memref<2x8x128xf32, #tpu.memory_space<vmem>>) attributes {dimension_semantics = [#tpu.dimension_semantics<arbitrary>], iteration_bounds = array<i64: 2>, scalar_prefetch = 0 : i64, scratch_operands = 1 : i64, tpu.core_type = #tpu.core_type<tc>, window_params = [{pipeline_mode = #tpu.pipeline_mode<synchronous>, transform_indices = @transform_0, window_bounds = array<i64: 2, 8, 128>}, {pipeline_mode = #tpu.pipeline_mode<synchronous>, transform_indices = @transform_1, window_bounds = array<i64: 2, 8, 1>}, {transform_indices = @transform_2, window_bounds = array<i64: 1, 128, 512>}, {transform_indices = @transform_3, window_bounds = array<i64: 1, 1, 256>}, {transform_indices = @transform_4, window_bounds = array<i64: 1, 1, 128>}, {transform_indices = @transform_5, window_bounds = array<i64: 1, 1, 128>}, {transform_indices = @transform_6, window_bounds = array<i64: 1, 1, 128>}, {transform_indices = @transform_7, window_bounds = array<i64: 1, 1, 128>}, {pipeline_mode = #tpu.pipeline_mode<synchronous>, transform_indices = @transform_8, window_bounds = array<i64: 2, 8, 128>}]} {
    %c0_i32 = arith.constant 0 : i32
    %0 = arith.cmpi eq, %arg0, %c0_i32 : i32
    %1 = arith.extui %0 : i1 to i32
    %c0_i32_0 = arith.constant 0 : i32
    %2 = arith.cmpi ne, %1, %c0_i32_0 : i32
    scf.if %2 {
      %c0_42 = arith.constant 0 : index
      %c0_43 = arith.constant 0 : index
      %c0_44 = arith.constant 0 : index
      %98 = vector.load %arg1[%c0_42, %c0_43, %c0_44] : memref<2x8x128xf32, #tpu.memory_space<vmem>>, vector<2x8x128xf32>
      %c0_45 = arith.constant 0 : index
      %c0_46 = arith.constant 0 : index
      %c0_47 = arith.constant 0 : index
      %99 = vector.load %arg10[%c0_45, %c0_46, %c0_47] : memref<2x8x128xf32, #tpu.memory_space<vmem>>, vector<2x8x128xf32>
      tpu.vector_store %arg10[%c0_45, %c0_46, %c0_47], %98 {strides = array<i32>} : memref<2x8x128xf32, #tpu.memory_space<vmem>>, vector<2x8x128xf32>,
    } else {
    }
    %c0 = arith.constant 0 : index
    %c0_1 = arith.constant 0 : index
    %c0_2 = arith.constant 0 : index
    %3 = vector.load %arg10[%c0, %c0_1, %c0_2] : memref<2x8x128xf32, #tpu.memory_space<vmem>>, vector<2x8x128xf32>
    %c0_3 = arith.constant 0 : index
    %c0_4 = arith.constant 0 : index
    %c0_5 = arith.constant 0 : index
    %4 = vector.load %arg2[%c0_3, %c0_4, %c0_5] : memref<2x8x1xf32, #tpu.memory_space<vmem>>, vector<2x8x1xf32>
    %5 = vector.shape_cast %3 : vector<2x8x128xf32> to vector<16x128xf32>
    %c0_6 = arith.constant 0 : index
    %c0_7 = arith.constant 0 : index
    %c0_8 = arith.constant 0 : index
    %6 = vector.load %arg3[%c0_6, %c0_7, %c0_8] : memref<1x128x512xf32, #tpu.memory_space<vmem>>, vector<1x128x512xf32>
    %7 = vector.shape_cast %6 : vector<1x128x512xf32> to vector<128x512xf32>
    %cst = arith.constant dense<0.000000e+00> : vector<16x512xf32>
    %8 = tpu.matmul %5, %7, %cst {dimension_numbers = #tpu.dot_dimension_numbers<[1], [0], [0], [1], [0, 0, 1, 1], [], []>} : vector<16x128xf32>, vector<128x512xf32>, vector<16x512xf32> -> vector<16x512xf32>
    %9 = vector.shape_cast %8 : vector<16x512xf32> to vector<2x8x512xf32>
    %10 = vector.extract_strided_slice %9 {offsets = [0, 0, 0], sizes = [2, 8, 256], strides = [1, 1, 1]} : vector<2x8x512xf32> to vector<2x8x256xf32>
    %c0_9 = arith.constant 0 : index
    %c0_10 = arith.constant 0 : index
    %c0_11 = arith.constant 0 : index
    %11 = vector.load %arg4[%c0_9, %c0_10, %c0_11] : memref<1x1x256xf32, #tpu.memory_space<vmem>>, vector<1x1x256xf32>
    %12 = vector.shape_cast %11 : vector<1x1x256xf32> to vector<1x256xf32>
    %13 = vector.shape_cast %12 : vector<1x256xf32> to vector<1x1x256xf32>
    %14 = vector.broadcast %13 : vector<1x1x256xf32> to vector<2x8x256xf32>
    %15 = arith.addf %10, %14 : vector<2x8x256xf32>
    %16 = vector.extract_strided_slice %15 {offsets = [0, 0, 0], sizes = [2, 8, 128], strides = [1, 1, 1]} : vector<2x8x256xf32> to vector<2x8x128xf32>
    %17 = vector.extract_strided_slice %15 {offsets = [0, 0, 128], sizes = [2, 8, 128], strides = [1, 1, 1]} : vector<2x8x256xf32> to vector<2x8x128xf32>
    %cst_12 = arith.constant dense<0.000000e+00> : vector<2x1xf32>
    %18 = vector.multi_reduction <add>, %4, %cst_12 [1] : vector<2x8x1xf32> to vector<2x1xf32>
    %19 = vector.shape_cast %18 : vector<2x1xf32> to vector<2x1x1xf32>
    %20 = vector.extract_strided_slice %9 {offsets = [0, 0, 256], sizes = [2, 8, 128], strides = [1, 1, 1]} : vector<2x8x512xf32> to vector<2x8x128xf32>
    %21 = vector.broadcast %4 : vector<2x8x1xf32> to vector<2x8x128xf32>
    %22 = arith.mulf %20, %21 : vector<2x8x128xf32>
    %cst_13 = arith.constant dense<0.000000e+00> : vector<2x128xf32>
    %23 = vector.multi_reduction <add>, %22, %cst_13 [1] : vector<2x8x128xf32> to vector<2x128xf32>
    %24 = vector.shape_cast %23 : vector<2x128xf32> to vector<2x1x128xf32>
    %25 = vector.broadcast %19 : vector<2x1x1xf32> to vector<2x1x128xf32>
    %26 = arith.divf %24, %25 : vector<2x1x128xf32>
    %c0_14 = arith.constant 0 : index
    %c0_15 = arith.constant 0 : index
    %c0_16 = arith.constant 0 : index
    %27 = vector.load %arg5[%c0_14, %c0_15, %c0_16] : memref<1x1x128xf32, #tpu.memory_space<vmem>>, vector<1x1x128xf32>
    %28 = vector.shape_cast %27 : vector<1x1x128xf32> to vector<1x128xf32>
    %29 = vector.shape_cast %28 : vector<1x128xf32> to vector<1x1x128xf32>
    %30 = vector.broadcast %29 : vector<1x1x128xf32> to vector<2x1x128xf32>
    %31 = arith.addf %26, %30 : vector<2x1x128xf32>
    %32 = vector.extract_strided_slice %9 {offsets = [0, 0, 384], sizes = [2, 8, 128], strides = [1, 1, 1]} : vector<2x8x512xf32> to vector<2x8x128xf32>
    %33 = vector.broadcast %4 : vector<2x8x1xf32> to vector<2x8x128xf32>
    %34 = arith.mulf %32, %33 : vector<2x8x128xf32>
    %cst_17 = arith.constant dense<0.000000e+00> : vector<2x128xf32>
    %35 = vector.multi_reduction <add>, %34, %cst_17 [1] : vector<2x8x128xf32> to vector<2x128xf32>
    %36 = vector.shape_cast %35 : vector<2x128xf32> to vector<2x1x128xf32>
    %37 = vector.broadcast %19 : vector<2x1x1xf32> to vector<2x1x128xf32>
    %38 = arith.divf %36, %37 : vector<2x1x128xf32>
    %c0_18 = arith.constant 0 : index
    %c0_19 = arith.constant 0 : index
    %c0_20 = arith.constant 0 : index
    %39 = vector.load %arg6[%c0_18, %c0_19, %c0_20] : memref<1x1x128xf32, #tpu.memory_space<vmem>>, vector<1x1x128xf32>
    %40 = vector.shape_cast %39 : vector<1x1x128xf32> to vector<1x128xf32>
    %41 = vector.shape_cast %40 : vector<1x128xf32> to vector<1x1x128xf32>
    %42 = vector.broadcast %41 : vector<1x1x128xf32> to vector<2x1x128xf32>
    %43 = arith.addf %38, %42 : vector<2x1x128xf32>
    %44 = vector.broadcast %43 : vector<2x1x128xf32> to vector<2x8x128xf32>
    %45 = arith.addf %17, %44 : vector<2x8x128xf32>
    %46 = arith.negf %45 : vector<2x8x128xf32>
    %47 = math.exp %46 : vector<2x8x128xf32>
    %cst_21 = arith.constant 1.000000e+00 : f32
    %48 = vector.broadcast %cst_21 : f32 to vector<2x8x128xf32>
    %49 = arith.addf %48, %47 : vector<2x8x128xf32>
    %50 = arith.divf %48, %49 : vector<2x8x128xf32>
    %51 = arith.mulf %16, %50 : vector<2x8x128xf32>
    %cst_22 = arith.constant 1.000000e+00 : f32
    %52 = vector.broadcast %cst_22 : f32 to vector<2x8x128xf32>
    %53 = arith.subf %52, %50 : vector<2x8x128xf32>
    %54 = vector.broadcast %31 : vector<2x1x128xf32> to vector<2x8x128xf32>
    %55 = arith.mulf %54, %53 : vector<2x8x128xf32>
    %56 = arith.addf %51, %55 : vector<2x8x128xf32>
    %cst_23 = arith.constant 0.000000e+00 : f32
    %57 = vector.broadcast %cst_23 : f32 to vector<2x8x128xf32>
    %58 = arith.cmpf ogt, %56, %57 : vector<2x8x128xf32>
    %cst_24 = arith.constant 2.000000e+00 : f32
    %59 = vector.broadcast %cst_24 : f32 to vector<2x8x128xf32>
    %60 = arith.mulf %59, %56 : vector<2x8x128xf32>
    %61 = arith.select %58, %60, %56 : vector<2x8x128xi1>, vector<2x8x128xf32>
    %c0_25 = arith.constant 0 : index
    %c0_26 = arith.constant 0 : index
    %c0_27 = arith.constant 0 : index
    %62 = vector.load %arg7[%c0_25, %c0_26, %c0_27] : memref<1x1x128xf32, #tpu.memory_space<vmem>>, vector<1x1x128xf32>
    %63 = vector.shape_cast %62 : vector<1x1x128xf32> to vector<1x128xf32>
    %c0_28 = arith.constant 0 : index
    %c0_29 = arith.constant 0 : index
    %c0_30 = arith.constant 0 : index
    %64 = vector.load %arg8[%c0_28, %c0_29, %c0_30] : memref<1x1x128xf32, #tpu.memory_space<vmem>>, vector<1x1x128xf32>
    %65 = vector.shape_cast %64 : vector<1x1x128xf32> to vector<1x128xf32>
    %cst_31 = arith.constant dense<0.000000e+00> : vector<2x8xf32>
    %66 = vector.multi_reduction <add>, %61, %cst_31 [2] : vector<2x8x128xf32> to vector<2x8xf32>
    %67 = vector.shape_cast %66 : vector<2x8xf32> to vector<2x8x1xf32>
    %cst_32 = arith.constant 3.125000e-02 : f32
    %68 = vector.broadcast %cst_32 : f32 to vector<2x8x1xf32>
    %69 = arith.mulf %67, %68 : vector<2x8x1xf32>
    %70 = tpu.iota {dimensions = array<i32: 1>} : vector<1x128xi32>
    %c32_i32 = arith.constant 32 : i32
    %71 = vector.broadcast %c32_i32 : i32 to vector<1x128xi32>
    %72 = arith.cmpi slt, %70, %71 : vector<1x128xi32>
    %73 = arith.extui %72 : vector<1x128xi1> to vector<1x128xi32>
    %74 = arith.sitofp %73 : vector<1x128xi32> to vector<1x128xf32>
    %75 = vector.broadcast %69 : vector<2x8x1xf32> to vector<2x8x128xf32>
    %76 = arith.subf %61, %75 : vector<2x8x128xf32>
    %77 = vector.shape_cast %74 : vector<1x128xf32> to vector<1x1x128xf32>
    %78 = vector.broadcast %77 : vector<1x1x128xf32> to vector<2x8x128xf32>
    %79 = arith.mulf %76, %78 : vector<2x8x128xf32>
    %80 = arith.mulf %79, %79 : vector<2x8x128xf32>
    %cst_33 = arith.constant dense<0.000000e+00> : vector<2x8xf32>
    %81 = vector.multi_reduction <add>, %80, %cst_33 [2] : vector<2x8x128xf32> to vector<2x8xf32>
    %82 = vector.shape_cast %81 : vector<2x8xf32> to vector<2x8x1xf32>
    %cst_34 = arith.constant 3.125000e-02 : f32
    %83 = vector.broadcast %cst_34 : f32 to vector<2x8x1xf32>
    %84 = arith.mulf %82, %83 : vector<2x8x1xf32>
    %cst_35 = arith.constant 9.99999974E-6 : f32
    %85 = vector.broadcast %cst_35 : f32 to vector<2x8x1xf32>
    %86 = arith.addf %84, %85 : vector<2x8x1xf32>
    %87 = math.rsqrt %86 : vector<2x8x1xf32>
    %88 = vector.broadcast %87 : vector<2x8x1xf32> to vector<2x8x128xf32>
    %89 = arith.mulf %79, %88 : vector<2x8x128xf32>
    %90 = vector.shape_cast %63 : vector<1x128xf32> to vector<1x1x128xf32>
    %91 = vector.broadcast %90 : vector<1x1x128xf32> to vector<2x8x128xf32>
    %92 = arith.mulf %89, %91 : vector<2x8x128xf32>
    %93 = vector.shape_cast %65 : vector<1x128xf32> to vector<1x1x128xf32>
    %94 = vector.broadcast %93 : vector<1x1x128xf32> to vector<2x8x128xf32>
    %95 = arith.addf %92, %94 : vector<2x8x128xf32>
    %c0_36 = arith.constant 0 : index
    %c0_37 = arith.constant 0 : index
    %c0_38 = arith.constant 0 : index
    %96 = vector.load %arg10[%c0_36, %c0_37, %c0_38] : memref<2x8x128xf32, #tpu.memory_space<vmem>>, vector<2x8x128xf32>
    tpu.vector_store %arg10[%c0_36, %c0_37, %c0_38], %95 {strides = array<i32>} : memref<2x8x128xf32, #tpu.memory_space<vmem>>, vector<2x8x128xf32>,
    %c0_39 = arith.constant 0 : index
    %c0_40 = arith.constant 0 : index
    %c0_41 = arith.constant 0 : index
    %97 = vector.load %arg9[%c0_39, %c0_40, %c0_41] : memref<2x8x128xf32, #tpu.memory_space<vmem>>, vector<2x8x128xf32>
    tpu.vector_store %arg9[%c0_39, %c0_40, %c0_41], %95 {strides = array<i32>} : memref<2x8x128xf32, #tpu.memory_space<vmem>>, vector<2x8x128xf32>,
    return
  }
  func.func @transform_0(%arg0: i32) -> (i32, i32, i32) {
    %c0_i32 = arith.constant 0 : i32
    %c0_i32_0 = arith.constant 0 : i32
    %c0_i32_1 = arith.constant 0 : i32
    %c0_i32_2 = arith.constant 0 : i32
    return %c0_i32, %c0_i32_0, %c0_i32_1 : i32, i32, i32
  }
  func.func @transform_1(%arg0: i32) -> (i32, i32, i32) {
    %c0_i32 = arith.constant 0 : i32
    %c0_i32_0 = arith.constant 0 : i32
    %c0_i32_1 = arith.constant 0 : i32
    %c0_i32_2 = arith.constant 0 : i32
    return %c0_i32, %c0_i32_0, %c0_i32_1 : i32, i32, i32
  }
  func.func @transform_2(%arg0: i32) -> (i32, i32, i32) {
    %c0_i32 = arith.constant 0 : i32
    %c0_i32_0 = arith.constant 0 : i32
    %c0_i32_1 = arith.constant 0 : i32
    return %arg0, %c0_i32, %c0_i32_0 : i32, i32, i32
  }
  func.func @transform_3(%arg0: i32) -> (i32, i32, i32) {
    %c0_i32 = arith.constant 0 : i32
    %c0_i32_0 = arith.constant 0 : i32
    %c0_i32_1 = arith.constant 0 : i32
    return %arg0, %c0_i32, %c0_i32_0 : i32, i32, i32
  }
  func.func @transform_4(%arg0: i32) -> (i32, i32, i32) {
    %c0_i32 = arith.constant 0 : i32
    %c0_i32_0 = arith.constant 0 : i32
    %c0_i32_1 = arith.constant 0 : i32
    return %arg0, %c0_i32, %c0_i32_0 : i32, i32, i32
  }
  func.func @transform_5(%arg0: i32) -> (i32, i32, i32) {
    %c0_i32 = arith.constant 0 : i32
    %c0_i32_0 = arith.constant 0 : i32
    %c0_i32_1 = arith.constant 0 : i32
    return %arg0, %c0_i32, %c0_i32_0 : i32, i32, i32
  }
  func.func @transform_6(%arg0: i32) -> (i32, i32, i32) {
    %c0_i32 = arith.constant 0 : i32
    %c0_i32_0 = arith.constant 0 : i32
    %c0_i32_1 = arith.constant 0 : i32
    return %arg0, %c0_i32, %c0_i32_0 : i32, i32, i32
  }
  func.func @transform_7(%arg0: i32) -> (i32, i32, i32) {
    %c0_i32 = arith.constant 0 : i32
    %c0_i32_0 = arith.constant 0 : i32
    %c0_i32_1 = arith.constant 0 : i32
    return %arg0, %c0_i32, %c0_i32_0 : i32, i32, i32
  }
  func.func @transform_8(%arg0: i32) -> (i32, i32, i32) {
    %c0_i32 = arith.constant 0 : i32
    %c0_i32_0 = arith.constant 0 : i32
    %c0_i32_1 = arith.constant 0 : i32
    %c0_i32_2 = arith.constant 0 : i32
    return %c0_i32, %c0_i32_0, %c0_i32_1 : i32, i32, i32
  }
}

</mosaic_0001>

<llo_original>
// kernel: tpu_custom_call.1
$region0: #{tpu_custom_call.1}
  #allocation0 [shape = 'u32[]', space=smem, size = 0x4, offset = 0x4, fixed_abs, tag = 'smem constant byte address 0x4 - core index']
  #allocation1 [shape = 'u32[144,128]{1,0:T(1,128)}', space=vmem, size = 0x12000, scoped, tag = 'internal scratch']
  #allocation2 [shape = 'f32[2,8,128]{2,1,0:T(8,128)}', space=vmem, size = 0x2000, scoped, tag = 'scratch operand']
  %s0 = inlined_call_operand.vmem [shape: f32[2,8,128], index: 0, kind: input, shape index: {}]
  %s1 = inlined_call_operand.vmem [shape: f32[2,8,1], index: 1, kind: input, shape index: {}]
  %s2 = inlined_call_operand.hbm [shape: f32[2,128,512], index: 2, kind: input, shape index: {}]
  %s3 = inlined_call_operand.vmem [shape: f32[2,1,256], index: 3, kind: input, shape index: {}]
  %s4 = inlined_call_operand.vmem [shape: f32[2,1,128], index: 4, kind: input, shape index: {}]
  %s5 = inlined_call_operand.vmem [shape: f32[2,1,128], index: 5, kind: input, shape index: {}]
  %s6 = inlined_call_operand.vmem [shape: f32[2,1,128], index: 6, kind: input, shape index: {}]
  %s7 = inlined_call_operand.vmem [shape: f32[2,1,128], index: 7, kind: input, shape index: {}]
  %s8 = inlined_call_operand.hbm [shape: f32[2,8,128], index: 8, kind: output, shape index: {}]
  %s9 = sld [smem:[#allocation0]]
  $region73: #{tpu_custom_call.1} parent=0
    _
  %s11 = ssub.s32 1, %s9
  %s12 = scalar_select 0, %s11, %s9
  $region1: #{tpu_custom_call.1} parent=0
    #allocation3 [shape = 'u8[524288]{0}', space=vmem, size = 0x80000, scoped, tag = 'input window, operand 2']
    #allocation4 [shape = 's32[2]{0}', space=sflag, size = 0x8, scoped, tag = 'scoped memory for tpu_custom_call.1']
    #allocation5 [shape = 's32[2]{0}', space=sflag, size = 0x8, scoped, tag = 'scoped memory for tpu_custom_call.1']
    #allocation6 [shape = 'u8[8192]{0}', space=vmem, size = 0x2000, scoped, tag = 'output window, operand 0, single buffered']
    %13 = vsyncpa [#allocation4], 0
    %s14 = scalar_lea.sflag [#allocation4], 1
    %15 = vsyncpa %s14, 0
    %16 = vsyncpa [#allocation5], 0
    loop: start=0, step=1, limit=4
    $region2: #{tpu_custom_call.1} parent=1 // loop_pre_header
      _
    $region3: #{tpu_custom_call.1} parent=1 // loop_header
      %s18 = sphi 0, %s22
      %p19 = scmp.ge.s32.totalorder %s18, 4
      %s26 = sphi 0, %s26
      %s28 = sphi 0, %s26
      %s29 = sphi 0, %s28
      %s43 = sphi 0, %s29
      %s47 = sphi 0, %s47
      %s49 = sphi 0, %s47
      %s50 = sphi 0, %s49
      %s64 = sphi 0, %s50
      %s70 = sphi 0, %s72
      %s73 = sphi 0, %s70
      %s74 = sphi 0, %s73
      %s90 = sphi 0, %s74
      %s96 = sphi 0, %s98
      %s99 = sphi 0, %s96
      %s100 = sphi 0, %s99
      %s116 = sphi 0, %s100
      %s122 = sphi 0, %s124
      %s125 = sphi 0, %s122
      %s126 = sphi 0, %s125
      %s142 = sphi 0, %s126
      %s148 = sphi 0, %s150
      %s151 = sphi 0, %s148
      %s152 = sphi 0, %s151
      %s168 = sphi 0, %s152
      %s174 = sphi 0, %s176
      %s177 = sphi 0, %s174
      %s178 = sphi 0, %s177
      %s194 = sphi 0, %s178
      %s200 = sphi 0, %s202
      %s203 = sphi 0, %s200
      %s204 = sphi 0, %s203
      %s220 = sphi 0, %s204
      %s224 = sphi 0, %s224
      %s226 = sphi 0, %s224
      %s227 = sphi 0, %s226
      %s241 = sphi 0, %s227
    $region4: #{tpu_custom_call.1} parent=1 // loop_header_branch
      %21 = sbr.rel (%p19) target = $region8
    $region5: #{tpu_custom_call.1} parent=1 // loop_body
      %s23 = ssub.s32 %s18, 1
      %s24 = ssub.s32 %s18, 2
      %s25 = sadd.s32 %s18, 1
      %s27 = sadd.s32 %s26, 1
      %p30 = scmp.eq.s32.totalorder %s18, 1
      %p31 = scmp.ne.s32.totalorder %s26, %s28
      %p32 = scmp.eq.s32.totalorder %s18, 0
      %p33 = por %p31, %p32
      %p34 = scmp.ne.s32.totalorder %s26, %s28
      %p35 = scmp.eq.s32.totalorder %s23, 1
      %p36 = por %p34, %p35
      %p37 = scmp.ne.s32.totalorder %s28, %s29
      %p38 = scmp.eq.s32.totalorder %s23, 0
      %p39 = por %p37, %p38
      %p40 = scmp.ne.s32.totalorder %s28, %s29
      %p41 = scmp.eq.s32.totalorder %s24, 1
      %p42 = por %p40, %p41
      %p44 = scmp.ne.s32.totalorder %s29, %s43
      %p45 = scmp.eq.s32.totalorder %s24, 0
      %p46 = por %p44, %p45
      %s48 = sadd.s32 %s47, 1
      %p51 = scmp.eq.s32.totalorder %s18, 1
      %p52 = scmp.ne.s32.totalorder %s47, %s49
      %p53 = scmp.eq.s32.totalorder %s18, 0
      %p54 = por %p52, %p53
      %p55 = scmp.ne.s32.totalorder %s47, %s49
      %p56 = scmp.eq.s32.totalorder %s23, 1
      %p57 = por %p55, %p56
      %p58 = scmp.ne.s32.totalorder %s49, %s50
      %p59 = scmp.eq.s32.totalorder %s23, 0
      %p60 = por %p58, %p59
      %p61 = scmp.ne.s32.totalorder %s49, %s50
      %p62 = scmp.eq.s32.totalorder %s24, 1
      %p63 = por %p61, %p62
      %p65 = scmp.ne.s32.totalorder %s50, %s64
      %p66 = scmp.eq.s32.totalorder %s24, 0
      %p67 = por %p65, %p66
      %s68 = ssub.s32 %s18, %s25
      %p69 = scmp.eq.s32.totalorder %s68, 0
      %s71 = sadd.s32 %s70, 1
      %s72 = scalar_select %p69, %s70, %s71
      %p75 = pneg %p69
      %p76 = scmp.eq.s32.totalorder %s18, 1
      %p77 = por %p75, %p76
      %p78 = scmp.ne.s32.totalorder %s70, %s73
      %p79 = scmp.eq.s32.totalorder %s18, 0
      %p80 = por %p78, %p79
      %p81 = scmp.ne.s32.totalorder %s70, %s73
      %p82 = scmp.eq.s32.totalorder %s23, 1
      %p83 = por %p81, %p82
      %p84 = scmp.ne.s32.totalorder %s73, %s74
      %p85 = scmp.eq.s32.totalorder %s23, 0
      %p86 = por %p84, %p85
      %p87 = scmp.ne.s32.totalorder %s73, %s74
      %p88 = scmp.eq.s32.totalorder %s24, 1
      %p89 = por %p87, %p88
      %p91 = scmp.ne.s32.totalorder %s74, %s90
      %p92 = scmp.eq.s32.totalorder %s24, 0
      %p93 = por %p91, %p92
      %s94 = ssub.s32 %s18, %s25
      %p95 = scmp.eq.s32.totalorder %s94, 0
      %s97 = sadd.s32 %s96, 1
      %s98 = scalar_select %p95, %s96, %s97
      %p101 = pneg %p95
      %p102 = scmp.eq.s32.totalorder %s18, 1
      %p103 = por %p101, %p102
      %p104 = scmp.ne.s32.totalorder %s96, %s99
      %p105 = scmp.eq.s32.totalorder %s18, 0
      %p106 = por %p104, %p105
      %p107 = scmp.ne.s32.totalorder %s96, %s99
      %p108 = scmp.eq.s32.totalorder %s23, 1
      %p109 = por %p107, %p108
      %p110 = scmp.ne.s32.totalorder %s99, %s100
      %p111 = scmp.eq.s32.totalorder %s23, 0
      %p112 = por %p110, %p111
      %p113 = scmp.ne.s32.totalorder %s99, %s100
      %p114 = scmp.eq.s32.totalorder %s24, 1
      %p115 = por %p113, %p114
      %p117 = scmp.ne.s32.totalorder %s100, %s116
      %p118 = scmp.eq.s32.totalorder %s24, 0
      %p119 = por %p117, %p118
      %s120 = ssub.s32 %s18, %s25
      %p121 = scmp.eq.s32.totalorder %s120, 0
      %s123 = sadd.s32 %s122, 1
      %s124 = scalar_select %p121, %s122, %s123
      %p127 = pneg %p121
      %p128 = scmp.eq.s32.totalorder %s18, 1
      %p129 = por %p127, %p128
      %p130 = scmp.ne.s32.totalorder %s122, %s125
      %p131 = scmp.eq.s32.totalorder %s18, 0
      %p132 = por %p130, %p131
      %p133 = scmp.ne.s32.totalorder %s122, %s125
      %p134 = scmp.eq.s32.totalorder %s23, 1
      %p135 = por %p133, %p134
      %p136 = scmp.ne.s32.totalorder %s125, %s126
      %p137 = scmp.eq.s32.totalorder %s23, 0
      %p138 = por %p136, %p137
      %p139 = scmp.ne.s32.totalorder %s125, %s126
      %p140 = scmp.eq.s32.totalorder %s24, 1
      %p141 = por %p139, %p140
      %p143 = scmp.ne.s32.totalorder %s126, %s142
      %p144 = scmp.eq.s32.totalorder %s24, 0
      %p145 = por %p143, %p144
      %s146 = ssub.s32 %s18, %s25
      %p147 = scmp.eq.s32.totalorder %s146, 0
      %s149 = sadd.s32 %s148, 1
      %s150 = scalar_select %p147, %s148, %s149
      %p153 = pneg %p147
      %p154 = scmp.eq.s32.totalorder %s18, 1
      %p155 = por %p153, %p154
      %p156 = scmp.ne.s32.totalorder %s148, %s151
      %p157 = scmp.eq.s32.totalorder %s18, 0
      %p158 = por %p156, %p157
      %p159 = scmp.ne.s32.totalorder %s148, %s151
      %p160 = scmp.eq.s32.totalorder %s23, 1
      %p161 = por %p159, %p160
      %p162 = scmp.ne.s32.totalorder %s151, %s152
      %p163 = scmp.eq.s32.totalorder %s23, 0
      %p164 = por %p162, %p163
      %p165 = scmp.ne.s32.totalorder %s151, %s152
      %p166 = scmp.eq.s32.totalorder %s24, 1
      %p167 = por %p165, %p166
      %p169 = scmp.ne.s32.totalorder %s152, %s168
      %p170 = scmp.eq.s32.totalorder %s24, 0
      %p171 = por %p169, %p170
      %s172 = ssub.s32 %s18, %s25
      %p173 = scmp.eq.s32.totalorder %s172, 0
      %s175 = sadd.s32 %s174, 1
      %s176 = scalar_select %p173, %s174, %s175
      %p179 = pneg %p173
      %p180 = scmp.eq.s32.totalorder %s18, 1
      %p181 = por %p179, %p180
      %p182 = scmp.ne.s32.totalorder %s174, %s177
      %p183 = scmp.eq.s32.totalorder %s18, 0
      %p184 = por %p182, %p183
      %p185 = scmp.ne.s32.totalorder %s174, %s177
      %p186 = scmp.eq.s32.totalorder %s23, 1
      %p187 = por %p185, %p186
      %p188 = scmp.ne.s32.totalorder %s177, %s178
      %p189 = scmp.eq.s32.totalorder %s23, 0
      %p190 = por %p188, %p189
      %p191 = scmp.ne.s32.totalorder %s177, %s178
      %p192 = scmp.eq.s32.totalorder %s24, 1
      %p193 = por %p191, %p192
      %p195 = scmp.ne.s32.totalorder %s178, %s194
      %p196 = scmp.eq.s32.totalorder %s24, 0
      %p197 = por %p195, %p196
      %s198 = ssub.s32 %s18, %s25
      %p199 = scmp.eq.s32.totalorder %s198, 0
      %s201 = sadd.s32 %s200, 1
      %s202 = scalar_select %p199, %s200, %s201
      %p205 = pneg %p199
      %p206 = scmp.eq.s32.totalorder %s18, 1
      %p207 = por %p205, %p206
      %p208 = scmp.ne.s32.totalorder %s200, %s203
      %p209 = scmp.eq.s32.totalorder %s18, 0
      %p210 = por %p208, %p209
      %p211 = scmp.ne.s32.totalorder %s200, %s203
      %p212 = scmp.eq.s32.totalorder %s23, 1
      %p213 = por %p211, %p212
      %p214 = scmp.ne.s32.totalorder %s203, %s204
      %p215 = scmp.eq.s32.totalorder %s23, 0
      %p216 = por %p214, %p215
      %p217 = scmp.ne.s32.totalorder %s203, %s204
      %p218 = scmp.eq.s32.totalorder %s24, 1
      %p219 = por %p217, %p218
      %p221 = scmp.ne.s32.totalorder %s204, %s220
      %p222 = scmp.eq.s32.totalorder %s24, 0
      %p223 = por %p221, %p222
      %s225 = sadd.s32 %s224, 1
      %p228 = scmp.eq.s32.totalorder %s18, 1
      %p229 = scmp.ne.s32.totalorder %s224, %s226
      %p230 = scmp.eq.s32.totalorder %s18, 0
      %p231 = por %p229, %p230
      %p232 = scmp.ne.s32.totalorder %s224, %s226
      %p233 = scmp.eq.s32.totalorder %s23, 1
      %p234 = por %p232, %p233
      %p235 = scmp.ne.s32.totalorder %s226, %s227
      %p236 = scmp.eq.s32.totalorder %s23, 0
      %p237 = por %p235, %p236
      %p238 = scmp.ne.s32.totalorder %s226, %s227
      %p239 = scmp.eq.s32.totalorder %s24, 1
      %p240 = por %p238, %p239
      %p242 = scmp.ne.s32.totalorder %s227, %s241
      %p243 = scmp.eq.s32.totalorder %s24, 0
      %p244 = por %p242, %p243
      %p245 = scmp.le.s32.totalorder 1, %s18
      %p246 = scmp.lt.s32.totalorder %s18, 3
      %p247 = pnand %p245, %p246
      %p248 = pneg %p247
      // Predicated region
      $region9: #{tpu_custom_call.1} parent=5 // pred_check
        _
      $region10: #{tpu_custom_call.1} parent=5 // pred_check_branch
        %250 = sbr.rel (%p247) target = $region12
      $region11: #{tpu_custom_call.1} parent=5 // pred_region
        %s251 = ssub.s32 %s18, 1
        // Predicated region
        $region13: #{tpu_custom_call.1} parent=11 // pred_check
          %p252 = pneg %p39
        $region14: #{tpu_custom_call.1} parent=11 // pred_check_branch
          %254 = sbr.rel (%p252) target = $region16
        $region15: #{tpu_custom_call.1} parent=11 // pred_region
          _
        $region16: #{tpu_custom_call.1} parent=11 // pred_fallthru
          _
        // Predicated region
        $region17: #{tpu_custom_call.1} parent=11 // pred_check
          %p255 = pneg %p60
        $region18: #{tpu_custom_call.1} parent=11 // pred_check_branch
          %257 = sbr.rel (%p255) target = $region20
        $region19: #{tpu_custom_call.1} parent=11 // pred_region
          _
        $region20: #{tpu_custom_call.1} parent=11 // pred_fallthru
          _
      $region12: #{tpu_custom_call.1} parent=5 // pred_fallthru
        _
      %p258 = scmp.lt.s32.totalorder %s18, 2
      // Predicated region
      $region21: #{tpu_custom_call.1} parent=5 // pred_check
        %p259 = pneg %p258
      $region22: #{tpu_custom_call.1} parent=5 // pred_check_branch
        %261 = sbr.rel (%p259) target = $region24
      $region23: #{tpu_custom_call.1} parent=5 // pred_region
        // Predicated region
        $region25: #{tpu_custom_call.1} parent=23 // pred_check
          %p262 = pneg %p80
        $region26: #{tpu_custom_call.1} parent=23 // pred_check_branch
          %264 = sbr.rel (%p262) target = $region28
        $region27: #{tpu_custom_call.1} parent=23 // pred_region
          %s265 = sand.u32 %s70, 1
          %s266 = scalar_lea.sflag [#allocation4], %s265
          %s267 = sand.u32 %s70, 1
          %s268 = smul.addr %s267, 512
          %s269 = scalar_lea.vmem [#allocation3], %s268
          %s271 = ssub.s32 8192, 8192
          %272 = vsyncadd %s266, %s271
          %s273 = smul.addr %s18, 64
          %s274 = smul.addr %s273, 128
          %s275 = scalar_lea.hbm %s2, %s274
          %s276 = sshll.u32 %s269, 4
          %s277 = int_to_ptr.vmem [resolvable:$true] %s276
          %282 = dma.hbm_to_vmem [thread:$0]  %s275, 8192, %s277, %s266, 512, 512, 32
        $region28: #{tpu_custom_call.1} parent=23 // pred_fallthru
          _
        // Predicated region
        $region29: #{tpu_custom_call.1} parent=23 // pred_check
          %p283 = pneg %p106
        $region30: #{tpu_custom_call.1} parent=23 // pred_check_branch
          %285 = sbr.rel (%p283) target = $region32
        $region31: #{tpu_custom_call.1} parent=23 // pred_region
          %p286 = scmp.lt.s32.totalorder %s18, 1
          %s287 = scalar_select %p286, %s18, 1
          %s288 = smul.addr %s287, 2
          %s289 = scalar_lea.vmem %s3, %s288
        $region32: #{tpu_custom_call.1} parent=23 // pred_fallthru
          _
        // Predicated region
        $region33: #{tpu_custom_call.1} parent=23 // pred_check
          %p290 = pneg %p132
        $region34: #{tpu_custom_call.1} parent=23 // pred_check_branch
          %292 = sbr.rel (%p290) target = $region36
        $region35: #{tpu_custom_call.1} parent=23 // pred_region
          %p293 = scmp.lt.s32.totalorder %s18, 1
          %s294 = scalar_select %p293, %s18, 1
          %s295 = scalar_lea.vmem %s4, %s294
        $region36: #{tpu_custom_call.1} parent=23 // pred_fallthru
          _
        // Predicated region
        $region37: #{tpu_custom_call.1} parent=23 // pred_check
          %p296 = pneg %p158
        $region38: #{tpu_custom_call.1} parent=23 // pred_check_branch
          %298 = sbr.rel (%p296) target = $region40
        $region39: #{tpu_custom_call.1} parent=23 // pred_region
          %p299 = scmp.lt.s32.totalorder %s18, 1
          %s300 = scalar_select %p299, %s18, 1
          %s301 = scalar_lea.vmem %s5, %s300
        $region40: #{tpu_custom_call.1} parent=23 // pred_fallthru
          _
        // Predicated region
        $region41: #{tpu_custom_call.1} parent=23 // pred_check
          %p302 = pneg %p184
        $region42: #{tpu_custom_call.1} parent=23 // pred_check_branch
          %304 = sbr.rel (%p302) target = $region44
        $region43: #{tpu_custom_call.1} parent=23 // pred_region
          %p305 = scmp.lt.s32.totalorder %s18, 1
          %s306 = scalar_select %p305, %s18, 1
          %s307 = scalar_lea.vmem %s6, %s306
        $region44: #{tpu_custom_call.1} parent=23 // pred_fallthru
          _
        // Predicated region
        $region45: #{tpu_custom_call.1} parent=23 // pred_check
          %p308 = pneg %p210
        $region46: #{tpu_custom_call.1} parent=23 // pred_check_branch
          %310 = sbr.rel (%p308) target = $region48
        $region47: #{tpu_custom_call.1} parent=23 // pred_region
          %p311 = scmp.lt.s32.totalorder %s18, 1
          %s312 = scalar_select %p311, %s18, 1
          %s313 = scalar_lea.vmem %s7, %s312
        $region48: #{tpu_custom_call.1} parent=23 // pred_fallthru
          _
      $region24: #{tpu_custom_call.1} parent=5 // pred_fallthru
        _
      %p314 = scmp.le.s32.totalorder 1, %s18
      %p315 = scmp.lt.s32.totalorder %s18, 3
      %p316 = pnand %p314, %p315
      %p317 = pneg %p316
      // Predicated region
      $region49: #{tpu_custom_call.1} parent=5 // pred_check
        _
      $region50: #{tpu_custom_call.1} parent=5 // pred_check_branch
        %319 = sbr.rel (%p316) target = $region52
      $region51: #{tpu_custom_call.1} parent=5 // pred_region
        %s320 = ssub.s32 %s18, 1
        %s321 = sand.u32 %s73, 1
        %s322 = scalar_lea.sflag [#allocation4], %s321
        %s323 = sand.u32 %s73, 1
        %s324 = smul.addr %s323, 512
        %s325 = scalar_lea.vmem [#allocation3], %s324
        // Predicated region
        $region53: #{tpu_custom_call.1} parent=51 // pred_check
          %p326 = pneg %p86
        $region54: #{tpu_custom_call.1} parent=51 // pred_check_branch
          %328 = sbr.rel (%p326) target = $region56
        $region55: #{tpu_custom_call.1} parent=51 // pred_region
          %329 = dma.done %s322, 8192
        $region56: #{tpu_custom_call.1} parent=51 // pred_fallthru
          _
        %p330 = pneg %p39
        %p331 = pneg %p36
        %p332 = pneg %p60
        %p333 = pneg %p57
        %s334 = sand.u32 %s73, 1
        %s335 = scalar_lea.sflag [#allocation4], %s334
        %s336 = sand.u32 %s73, 1
        %s337 = smul.addr %s336, 512
        %s338 = scalar_lea.vmem [#allocation3], %s337
        %p339 = pneg %p86
        %p340 = pneg %p83
        %p341 = scmp.lt.s32.totalorder %s23, 1
        %s342 = scalar_select %p341, %s23, 1
        %s343 = smul.addr %s342, 2
        %s344 = scalar_lea.vmem %s3, %s343
        %p345 = pneg %p112
        %p346 = pneg %p109
        %p347 = scmp.lt.s32.totalorder %s23, 1
        %s348 = scalar_select %p347, %s23, 1
        %s349 = scalar_lea.vmem %s4, %s348
        %p350 = pneg %p138
        %p351 = pneg %p135
        %p352 = scmp.lt.s32.totalorder %s23, 1
        %s353 = scalar_select %p352, %s23, 1
        %s354 = scalar_lea.vmem %s5, %s353
        %p355 = pneg %p164
        %p356 = pneg %p161
        %p357 = scmp.lt.s32.totalorder %s23, 1
        %s358 = scalar_select %p357, %s23, 1
        %s359 = scalar_lea.vmem %s6, %s358
        %p360 = pneg %p190
        %p361 = pneg %p187
        %p362 = scmp.lt.s32.totalorder %s23, 1
        %s363 = scalar_select %p362, %s23, 1
        %s364 = scalar_lea.vmem %s7, %s363
        %p365 = pneg %p216
        %p366 = pneg %p213
        %p367 = pneg %p237
        %p368 = pneg %p234
        %p369 = scmp.lt.s32.totalorder %s23, 1
        %s370 = scalar_select %p369, %s23, 1
        %s371 = smul.addr %s370, 2
        %s372 = scalar_lea.vmem %s3, %s371
        %p373 = scmp.lt.s32.totalorder %s23, 1
        %s374 = scalar_select %p373, %s23, 1
        %s375 = scalar_lea.vmem %s4, %s374
        %p376 = scmp.lt.s32.totalorder %s23, 1
        %s377 = scalar_select %p376, %s23, 1
        %s378 = scalar_lea.vmem %s5, %s377
        %p379 = scmp.lt.s32.totalorder %s23, 1
        %s380 = scalar_select %p379, %s23, 1
        %s381 = scalar_lea.vmem %s6, %s380
        %p382 = scmp.lt.s32.totalorder %s23, 1
        %s383 = scalar_select %p382, %s23, 1
        %s384 = scalar_lea.vmem %s7, %s383
        %p385 = scmp.eq.s32.totalorder %s23, 0
        // Predicated region
        $region57: #{tpu_custom_call.1} parent=51 // pred_check
          %p386 = pneg %p385
        $region58: #{tpu_custom_call.1} parent=51 // pred_check_branch
          %388 = sbr.rel (%p386) target = $region60
        $region59: #{tpu_custom_call.1} parent=51 // pred_region
          %v389 = vld [vmem:[%s0] sm:$0xff]
          %v390 = vld [vmem:[%s0 + $0x8] sm:$0xff]
          %391 = vst [vmem:[#allocation2] sm:$0xff] %v389
          %392 = vst [vmem:[#allocation2 + $0x8] sm:$0xff] %v390
        $region60: #{tpu_custom_call.1} parent=51 // pred_fallthru
          _
        %v393 = vld [vmem:[#allocation2] sm:$0xff]
        %v394 = vld [vmem:[#allocation2 + $0x8] sm:$0xff]
        %v395 = vld [vmem:[%s1] sm:$0xff]
        %v396 = vld [vmem:[%s1 + $0x8] sm:$0xff]
        %v397 = vld [vmem:[%s325] sm:$0xff]
        %v398 = vld [vmem:[%s325 + $0x8] sm:$0xff]
        %v399 = vld [vmem:[%s325 + $0x10] sm:$0xff]
        %v400 = vld [vmem:[%s325 + $0x18] sm:$0xff]
        %v401 = vld [vmem:[%s325 + $0x20] sm:$0xff]
        %v402 = vld [vmem:[%s325 + $0x28] sm:$0xff]
        %v403 = vld [vmem:[%s325 + $0x30] sm:$0xff]
        %v404 = vld [vmem:[%s325 + $0x38] sm:$0xff]
        %v405 = vld [vmem:[%s325 + $0x40] sm:$0xff]
        %v406 = vld [vmem:[%s325 + $0x48] sm:$0xff]
        %v407 = vld [vmem:[%s325 + $0x50] sm:$0xff]
        %v408 = vld [vmem:[%s325 + $0x58] sm:$0xff]
        %v409 = vld [vmem:[%s325 + $0x60] sm:$0xff]
        %v410 = vld [vmem:[%s325 + $0x68] sm:$0xff]
        %v411 = vld [vmem:[%s325 + $0x70] sm:$0xff]
        %v412 = vld [vmem:[%s325 + $0x78] sm:$0xff]
        %v413 = vld [vmem:[%s325 + $0x80] sm:$0xff]
        %v414 = vld [vmem:[%s325 + $0x88] sm:$0xff]
        %v415 = vld [vmem:[%s325 + $0x90] sm:$0xff]
        %v416 = vld [vmem:[%s325 + $0x98] sm:$0xff]
        %v417 = vld [vmem:[%s325 + $0xa0] sm:$0xff]
        %v418 = vld [vmem:[%s325 + $0xa8] sm:$0xff]
        %v419 = vld [vmem:[%s325 + $0xb0] sm:$0xff]
        %v420 = vld [vmem:[%s325 + $0xb8] sm:$0xff]
        %v421 = vld [vmem:[%s325 + $0xc0] sm:$0xff]
        %v422 = vld [vmem:[%s325 + $0xc8] sm:$0xff]
        %v423 = vld [vmem:[%s325 + $0xd0] sm:$0xff]
        %v424 = vld [vmem:[%s325 + $0xd8] sm:$0xff]
        %v425 = vld [vmem:[%s325 + $0xe0] sm:$0xff]
        %v426 = vld [vmem:[%s325 + $0xe8] sm:$0xff]
        %v427 = vld [vmem:[%s325 + $0xf0] sm:$0xff]
        %v428 = vld [vmem:[%s325 + $0xf8] sm:$0xff]
        %v429 = vld [vmem:[%s325 + $0x100] sm:$0xff]
        %v430 = vld [vmem:[%s325 + $0x108] sm:$0xff]
        %v431 = vld [vmem:[%s325 + $0x110] sm:$0xff]
        %v432 = vld [vmem:[%s325 + $0x118] sm:$0xff]
        %v433 = vld [vmem:[%s325 + $0x120] sm:$0xff]
        %v434 = vld [vmem:[%s325 + $0x128] sm:$0xff]
        %v435 = vld [vmem:[%s325 + $0x130] sm:$0xff]
        %v436 = vld [vmem:[%s325 + $0x138] sm:$0xff]
        %v437 = vld [vmem:[%s325 + $0x140] sm:$0xff]
        %v438 = vld [vmem:[%s325 + $0x148] sm:$0xff]
        %v439 = vld [vmem:[%s325 + $0x150] sm:$0xff]
        %v440 = vld [vmem:[%s325 + $0x158] sm:$0xff]
        %v441 = vld [vmem:[%s325 + $0x160] sm:$0xff]
        %v442 = vld [vmem:[%s325 + $0x168] sm:$0xff]
        %v443 = vld [vmem:[%s325 + $0x170] sm:$0xff]
        %v444 = vld [vmem:[%s325 + $0x178] sm:$0xff]
        %v445 = vld [vmem:[%s325 + $0x180] sm:$0xff]
        %v446 = vld [vmem:[%s325 + $0x188] sm:$0xff]
        %v447 = vld [vmem:[%s325 + $0x190] sm:$0xff]
        %v448 = vld [vmem:[%s325 + $0x198] sm:$0xff]
        %v449 = vld [vmem:[%s325 + $0x1a0] sm:$0xff]
        %v450 = vld [vmem:[%s325 + $0x1a8] sm:$0xff]
        %v451 = vld [vmem:[%s325 + $0x1b0] sm:$0xff]
        %v452 = vld [vmem:[%s325 + $0x1b8] sm:$0xff]
        %v453 = vld [vmem:[%s325 + $0x1c0] sm:$0xff]
        %v454 = vld [vmem:[%s325 + $0x1c8] sm:$0xff]
        %v455 = vld [vmem:[%s325 + $0x1d0] sm:$0xff]
        %v456 = vld [vmem:[%s325 + $0x1d8] sm:$0xff]
        %v457 = vld [vmem:[%s325 + $0x1e0] sm:$0xff]
        %v458 = vld [vmem:[%s325 + $0x1e8] sm:$0xff]
        %v459 = vld [vmem:[%s325 + $0x1f0] sm:$0xff]
        %v460 = vld [vmem:[%s325 + $0x1f8] sm:$0xff]
        %461 = vmatprep.subr.mxu0 %v458
        %462 = vmatpush1.msra.mxu0 %v457
        %463 = vmatprep.subr.mxu0 %v454
        %464 = vmatpush1.msra.mxu0 %v453
        %465 = vmatprep.subr.mxu0 %v450
        %466 = vmatpush1.msra.mxu0 %v449
        %467 = vmatprep.subr.mxu0 %v446
        %468 = vmatpush1.msra.mxu0 %v445
        %469 = vmatprep.subr.mxu0 %v442
        %470 = vmatpush1.msra.mxu0 %v441
        %471 = vmatprep.subr.mxu0 %v438
        %472 = vmatpush1.msra.mxu0 %v437
        %473 = vmatprep.subr.mxu0 %v434
        %474 = vmatpush1.msra.mxu0 %v433
        %475 = vmatprep.subr.mxu0 %v430
        %476 = vmatpush1.msra.mxu0 %v429
        %477 = vmatprep.subr.mxu0 %v426
        %478 = vmatpush1.msra.mxu0 %v425
        %479 = vmatprep.subr.mxu0 %v422
        %480 = vmatpush1.msra.mxu0 %v421
        %481 = vmatprep.subr.mxu0 %v418
        %482 = vmatpush1.msra.mxu0 %v417
        %483 = vmatprep.subr.mxu0 %v414
        %484 = vmatpush1.msra.mxu0 %v413
        %485 = vmatprep.subr.mxu0 %v410
        %486 = vmatpush1.msra.mxu0 %v409
        %487 = vmatprep.subr.mxu0 %v406
        %488 = vmatpush1.msra.mxu0 %v405
        %489 = vmatprep.subr.mxu0 %v402
        %490 = vmatpush1.msra.mxu0 %v401
        %491 = vmatprep.subr.mxu0 %v398
        %492 = vmatpush1.msra.mxu0 %v397
        %493 = vmatprep.subr.mxu0 0.0
        %494 = vmatpush2.msra.mxu0 0.0
        %495 = vmatprep.subr.mxu0 0.0
        %496 = vmatpush2.msra.mxu0 0.0
        %497 = vmatprep.subr.mxu0 0.0
        %498 = vmatpush2.msra.mxu0 0.0
        %499 = vmatprep.subr.mxu0 0.0
        %500 = vmatpush2.msra.mxu0 0.0
        %501 = vmatprep.subr.mxu0 0.0
        %502 = vmatpush2.msra.mxu0 0.0
        %503 = vmatprep.subr.mxu0 0.0
        %504 = vmatpush2.msra.mxu0 0.0
        %505 = vmatprep.subr.mxu0 0.0
        %506 = vmatpush2.msra.mxu0 0.0
        %507 = vmatprep.subr.mxu0 0.0
        %508 = vmatpush2.msra.mxu0 0.0
        %509 = vmatprep.subr.mxu0 0.0
        %510 = vmatpush2.msra.mxu0 0.0
        %511 = vmatprep.subr.mxu0 0.0
        %512 = vmatpush2.msra.mxu0 0.0
        %513 = vmatprep.subr.mxu0 0.0
        %514 = vmatpush2.msra.mxu0 0.0
        %515 = vmatprep.subr.mxu0 0.0
        %516 = vmatpush2.msra.mxu0 0.0
        %517 = vmatprep.subr.mxu0 0.0
        %518 = vmatpush2.msra.mxu0 0.0
        %519 = vmatprep.subr.mxu0 0.0
        %520 = vmatpush2.msra.mxu0 0.0
        %521 = vmatprep.subr.mxu0 0.0
        %522 = vmatpush2.msra.mxu0 0.0
        %523 = vmatprep.subr.mxu0 0.0
        %524 = vmatpush2.msra.mxu0 0.0
        %525 = vmatprep.mubr.f32.mxu0 0.0
        %526 = vmatmul.mubr.f32.gmra.mxu0 %v393
        %v527 = vpop.f32.mrf.mxu0
        %v528 = vadd.f32 0.0, %v527
        %v529 = vpop.f32.mrf.mxu0
        %v530 = vadd.f32 0.0, %v529
        %531 = vmatprep.mubr.f32.mxu0 0.0
        %532 = vmatmul.mubr.f32.gmra.mxu0 %v394
        %v533 = vpop.f32.mrf.mxu0
        %v534 = vadd.f32 0.0, %v533
        %v535 = vpop.f32.mrf.mxu0
        %v536 = vadd.f32 0.0, %v535
        %537 = vdwg.mxu0
        %538 = vmatprep.subr.mxu0 %v460
        %539 = vmatpush1.msra.mxu0 %v459
        %540 = vmatprep.subr.mxu0 %v456
        %541 = vmatpush1.msra.mxu0 %v455
        %542 = vmatprep.subr.mxu0 %v452
        %543 = vmatpush1.msra.mxu0 %v451
        %544 = vmatprep.subr.mxu0 %v448
        %545 = vmatpush1.msra.mxu0 %v447
        %546 = vmatprep.subr.mxu0 %v444
        %547 = vmatpush1.msra.mxu0 %v443
        %548 = vmatprep.subr.mxu0 %v440
        %549 = vmatpush1.msra.mxu0 %v439
        %550 = vmatprep.subr.mxu0 %v436
        %551 = vmatpush1.msra.mxu0 %v435
        %552 = vmatprep.subr.mxu0 %v432
        %553 = vmatpush1.msra.mxu0 %v431
        %554 = vmatprep.subr.mxu0 %v428
        %555 = vmatpush1.msra.mxu0 %v427
        %556 = vmatprep.subr.mxu0 %v424
        %557 = vmatpush1.msra.mxu0 %v423
        %558 = vmatprep.subr.mxu0 %v420
        %559 = vmatpush1.msra.mxu0 %v419
        %560 = vmatprep.subr.mxu0 %v416
        %561 = vmatpush1.msra.mxu0 %v415
        %562 = vmatprep.subr.mxu0 %v412
        %563 = vmatpush1.msra.mxu0 %v411
        %564 = vmatprep.subr.mxu0 %v408
        %565 = vmatpush1.msra.mxu0 %v407
        %566 = vmatprep.subr.mxu0 %v404
        %567 = vmatpush1.msra.mxu0 %v403
        %568 = vmatprep.subr.mxu0 %v400
        %569 = vmatpush1.msra.mxu0 %v399
        %570 = vmatprep.subr.mxu0 0.0
        %571 = vmatpush2.msra.mxu0 0.0
        %572 = vmatprep.subr.mxu0 0.0
        %573 = vmatpush2.msra.mxu0 0.0
        %574 = vmatprep.subr.mxu0 0.0
        %575 = vmatpush2.msra.mxu0 0.0
        %576 = vmatprep.subr.mxu0 0.0
        %577 = vmatpush2.msra.mxu0 0.0
        %578 = vmatprep.subr.mxu0 0.0
        %579 = vmatpush2.msra.mxu0 0.0
        %580 = vmatprep.subr.mxu0 0.0
        %581 = vmatpush2.msra.mxu0 0.0
        %582 = vmatprep.subr.mxu0 0.0
        %583 = vmatpush2.msra.mxu0 0.0
        %584 = vmatprep.subr.mxu0 0.0
        %585 = vmatpush2.msra.mxu0 0.0
        %586 = vmatprep.subr.mxu0 0.0
        %587 = vmatpush2.msra.mxu0 0.0
        %588 = vmatprep.subr.mxu0 0.0
        %589 = vmatpush2.msra.mxu0 0.0
        %590 = vmatprep.subr.mxu0 0.0
        %591 = vmatpush2.msra.mxu0 0.0
        %592 = vmatprep.subr.mxu0 0.0
        %593 = vmatpush2.msra.mxu0 0.0
        %594 = vmatprep.subr.mxu0 0.0
        %595 = vmatpush2.msra.mxu0 0.0
        %596 = vmatprep.subr.mxu0 0.0
        %597 = vmatpush2.msra.mxu0 0.0
        %598 = vmatprep.subr.mxu0 0.0
        %599 = vmatpush2.msra.mxu0 0.0
        %600 = vmatprep.subr.mxu0 0.0
        %601 = vmatpush2.msra.mxu0 0.0
        %602 = vmatprep.mubr.f32.mxu0 0.0
        %603 = vmatmul.mubr.f32.gmra.mxu0 %v393
        %v604 = vpop.f32.mrf.mxu0
        %v605 = vadd.f32 0.0, %v604
        %v606 = vpop.f32.mrf.mxu0
        %v607 = vadd.f32 0.0, %v606
        %608 = vmatprep.mubr.f32.mxu0 0.0
        %609 = vmatmul.mubr.f32.gmra.mxu0 %v394
        %v610 = vpop.f32.mrf.mxu0
        %v611 = vadd.f32 0.0, %v610
        %v612 = vpop.f32.mrf.mxu0
        %v613 = vadd.f32 0.0, %v612
        %614 = vdwg.mxu0
        %v615 = vld [vmem:[%s372] sm:$0x3]
        %v617 = vlaneseq
        %v618 = vshrl.u32 %v617, 7
        %v619 = vsub.s32 0, %v618
        %v620 = vrot.slane %v615, %v619
        %v621 = vlaneseq
        %v622 = vshrl.u32 %v621, 7
        %v623 = vsub.s32 1, %v622
        %v624 = vrot.slane %v615, %v623
        %v627 = vadd.f32 %v528, %v620
        %v628 = vadd.f32 %v530, %v624
        %v629 = vadd.f32 %v534, %v620
        %v630 = vadd.f32 %v536, %v624
        %vm631 = vcmask 7168
        %v632 = vsel %vm631, %v395, 0.0
        %v633 = vrot.slane %v632, 4
        %v634 = vadd.f32 %v632, %v633
        %v635 = vrot.slane %v634, 2
        %v636 = vadd.f32 %v634, %v635
        %v637 = vrot.slane %v636, 1
        %v638 = vadd.f32 %v636, %v637
        %v639 = vsel %vm631, %v396, 0.0
        %v640 = vrot.slane %v639, 4
        %v641 = vadd.f32 %v639, %v640
        %v642 = vrot.slane %v641, 2
        %v643 = vadd.f32 %v641, %v642
        %v644 = vrot.slane %v643, 1
        %v645 = vadd.f32 %v643, %v644
        %647 = vset.pattern.permute.xlu0 0
        %648 = vperm.xlu0 %647, %v395
        %v649 = vpop.permute.xlu0 %648
        %652 = vset.pattern.permute.xlu0 0
        %653 = vperm.xlu0 %652, %v396
        %v654 = vpop.permute.xlu0 %653
        %v656 = vmul.f32 %v605, %v649
        %v657 = vmul.f32 %v611, %v654
        %v658 = vrot.slane %v656, 4
        %v659 = vadd.f32 %v656, %v658
        %v660 = vrot.slane %v659, 2
        %v661 = vadd.f32 %v659, %v660
        %v662 = vrot.slane %v661, 1
        %v663 = vadd.f32 %v661, %v662
        %v664 = vrot.slane %v657, 4
        %v665 = vadd.f32 %v657, %v664
        %v666 = vrot.slane %v665, 2
        %v667 = vadd.f32 %v665, %v666
        %v668 = vrot.slane %v667, 1
        %v669 = vadd.f32 %v667, %v668
        %671 = vset.pattern.permute.xlu0 0
        %672 = vperm.xlu0 %671, %v638
        %v673 = vpop.permute.xlu0 %672
        %676 = vset.pattern.permute.xlu0 0
        %677 = vperm.xlu0 %676, %v645
        %v678 = vpop.permute.xlu0 %677
        %v680 = vrcp.pop %v673
        %v681 = vmul.f32 %v663, %v680
        %v682 = vrcp.pop %v678
        %v683 = vmul.f32 %v669, %v682
        %v684 = vld [vmem:[%s375] sm:$0x1]
        %v685 = vadd.f32 %v681, %v684
        %v686 = vadd.f32 %v683, %v684
        %v687 = vmul.f32 %v607, %v649
        %v688 = vmul.f32 %v613, %v654
        %v689 = vrot.slane %v687, 4
        %v690 = vadd.f32 %v687, %v689
        %v691 = vrot.slane %v690, 2
        %v692 = vadd.f32 %v690, %v691
        %v693 = vrot.slane %v692, 1
        %v694 = vadd.f32 %v692, %v693
        %v695 = vrot.slane %v688, 4
        %v696 = vadd.f32 %v688, %v695
        %v697 = vrot.slane %v696, 2
        %v698 = vadd.f32 %v696, %v697
        %v699 = vrot.slane %v698, 1
        %v700 = vadd.f32 %v698, %v699
        %v701 = vmul.f32 %v694, %v680
        %v702 = vmul.f32 %v700, %v682
        %v703 = vld [vmem:[%s378] sm:$0x1]
        %v704 = vadd.f32 %v701, %v703
        %v705 = vadd.f32 %v702, %v703
        %v706 = vlaneseq
        %v707 = vshrl.u32 %v706, 7
        %v708 = vsub.s32 0, %v707
        %v709 = vrot.slane %v704, %v708
        %v710 = vlaneseq
        %v711 = vshrl.u32 %v710, 7
        %v712 = vsub.s32 0, %v711
        %v713 = vrot.slane %v705, %v712
        %v714 = vadd.f32 %v628, %v709
        %v715 = vadd.f32 %v630, %v713
        %v716 = vxor.u32 %v714, 2147483648
        %v717 = vxor.u32 %v715, 2147483648
        %v718 = vmul.f32 %v716, 1.442695
        %v719 = vpow.pop %v718
        %v720 = vmul.f32 %v717, 1.442695
        %v721 = vpow.pop %v720
        %v722 = vadd.f32 %v719, 1.0
        %v723 = vadd.f32 %v721, 1.0
        %v724 = vrcp.pop %v722
        %v725 = vmul.f32 1.0, %v724
        %v726 = vrcp.pop %v723
        %v727 = vmul.f32 1.0, %v726
        %v728 = vmul.f32 %v627, %v725
        %v729 = vmul.f32 %v629, %v727
        %v730 = vsub.f32 1.0, %v725
        %v731 = vsub.f32 1.0, %v727
        %v732 = vlaneseq
        %v733 = vshrl.u32 %v732, 7
        %v734 = vsub.s32 0, %v733
        %v735 = vrot.slane %v685, %v734
        %v736 = vlaneseq
        %v737 = vshrl.u32 %v736, 7
        %v738 = vsub.s32 0, %v737
        %v739 = vrot.slane %v686, %v738
        %v740 = vmul.f32 %v735, %v730
        %v741 = vmul.f32 %v739, %v731
        %v742 = vadd.f32 %v728, %v740
        %v743 = vadd.f32 %v729, %v741
        %vm744 = vcmp.gt.f32.partialorder %v742, 0.0
        %vm745 = vcmp.gt.f32.partialorder %v743, 0.0
        %v746 = vmul.f32 %v742, 2.0
        %v747 = vmul.f32 %v743, 2.0
        %v748 = vsel %vm744, %v746, %v742
        %v749 = vsel %vm745, %v747, %v743
        %v750 = vld [vmem:[%s381] sm:$0x1]
        %v751 = vld [vmem:[%s384] sm:$0x1]
        %752 = vadd.xlane.f32.xlu0 %v748
        %v753 = vpop.xlane.xlu0 %752
        %754 = vadd.xlane.f32.xlu0 %v749
        %v755 = vpop.xlane.xlu0 %754
        %v756 = vmul.f32 %v753, 0.03125
        %v757 = vmul.f32 %v755, 0.03125
        %v758 = vlaneseq
        %v759 = vand.u32 %v758, 127
        %vm760 = vcmp.lt.s32.totalorder %v759, 32
        %v761 = vsel %vm760, 1, 0
        %v762 = vcvt.s32.f32 %v761
        %v763 = vsub.f32 %v748, %v756
        %v764 = vsub.f32 %v749, %v757
        %v765 = vmul.f32 %v763, %v762
        %v766 = vmul.f32 %v764, %v762
        %v767 = vmul.f32 %v765, %v765
        %v768 = vmul.f32 %v766, %v766
        %769 = vadd.xlane.f32.xlu0 %v767
        %v770 = vpop.xlane.xlu0 %769
        %771 = vadd.xlane.f32.xlu0 %v768
        %v772 = vpop.xlane.xlu0 %771
        %v773 = vmul.f32 %v770, 0.03125
        %v774 = vmul.f32 %v772, 0.03125
        %v775 = vadd.f32 %v773, 1e-05
        %v776 = vadd.f32 %v774, 1e-05
        %v777 = vrsqrt.pop %v775
        %v778 = vrsqrt.pop %v776
        %v779 = vmul.f32 %v765, %v777
        %v780 = vmul.f32 %v766, %v778
        %v782 = vlaneseq
        %v783 = vshrl.u32 %v782, 7
        %v784 = vsub.s32 0, %v783
        %v785 = vrot.slane %v750, %v784
        %v787 = vmul.f32 %v779, %v785
        %v788 = vmul.f32 %v780, %v785
        %v790 = vlaneseq
        %v791 = vshrl.u32 %v790, 7
        %v792 = vsub.s32 0, %v791
        %v793 = vrot.slane %v751, %v792
        %v795 = vadd.f32 %v787, %v793
        %v796 = vadd.f32 %v788, %v793
        %797 = vst [vmem:[#allocation2] sm:$0xff] %v795
        %798 = vst [vmem:[#allocation2 + $0x8] sm:$0xff] %v796
        %799 = vst [vmem:[#allocation6] sm:$0xff] %v795
        %800 = vst [vmem:[#allocation6 + $0x8] sm:$0xff] %v796
        // Predicated region
        $region61: #{tpu_custom_call.1} parent=51 // pred_check
          %p801 = pneg %p234
        $region62: #{tpu_custom_call.1} parent=51 // pred_check_branch
          %803 = sbr.rel (%p801) target = $region64
        $region63: #{tpu_custom_call.1} parent=51 // pred_region
          %s805 = ssub.s32 256, 256
          %806 = vsyncadd [#allocation5], %s805
          %s807 = sshll.u32 [#allocation6], 4
          %s808 = int_to_ptr.vmem [resolvable:$true] %s807
          %813 = dma.vmem_to_hbm [thread:$0]  %s808, 256, %s8, [#allocation5], 128, 128, 8
        $region64: #{tpu_custom_call.1} parent=51 // pred_fallthru
          _
        // Predicated region
        $region65: #{tpu_custom_call.1} parent=51 // pred_check
          %p814 = pneg %p234
        $region66: #{tpu_custom_call.1} parent=51 // pred_check_branch
          %816 = sbr.rel (%p814) target = $region68
        $region67: #{tpu_custom_call.1} parent=51 // pred_region
          %817 = dma.done [#allocation5], 256
        $region68: #{tpu_custom_call.1} parent=51 // pred_fallthru
          _
      $region52: #{tpu_custom_call.1} parent=5 // pred_fallthru
        _
      %p818 = scmp.le.s32.totalorder 2, %s18
      // Predicated region
      $region69: #{tpu_custom_call.1} parent=5 // pred_check
        %p819 = pneg %p818
      $region70: #{tpu_custom_call.1} parent=5 // pred_check_branch
        %821 = sbr.rel (%p819) target = $region72
      $region71: #{tpu_custom_call.1} parent=5 // pred_region
        %s822 = ssub.s32 %s18, 2
      $region72: #{tpu_custom_call.1} parent=5 // pred_fallthru
        _
    $region6: #{tpu_custom_call.1} parent=1 // loop_footer
      %s22 = sadd.s32 1, %s18
    $region7: #{tpu_custom_call.1} parent=1 // loop_footer_branch
      %17 = sbr.rel target = $region3
    $region8: #{tpu_custom_call.1} parent=1 // loop_exit
      _
    %823 = vsyncpa [#allocation4], 1
    %s824 = scalar_lea.sflag [#allocation4], 1
    %825 = vsyncpa %s824, 1
    %826 = vsyncpa [#allocation5], 1
    %s827 = scalar_lea.sflag [#allocation5], 1
    %828 = vsyncpa %s827, 1

</llo_original>
